<compile_context>
chip_gen: v7x
topology: tpu7x:2x2x1
jax: 0.10.0
libtpu: 0.0.40
codegen_flags: <defaults>
</compile_context>

<pallas_src>
import jax
import jax.numpy as jnp
import numpy as np
from jax.experimental import pallas as pl
from jax.experimental.pallas import tpu as pltpu

_LANE = 128
_SUBLANE = 8


def _round_up(a: int, b: int) -> int:
    return (a + b - 1) // b * b


def _conv_matmul_kernel(w_ref, b_ref, p_ref, o_ref, acc_ref):
    # One (tile_co, tk) @ (tk, tm) MXU step of out_T = W_T @ P_T, f32 accumulate.
    k = pl.program_id(2)

    @pl.when(k == 0)
    def _():
        acc_ref[...] = jnp.zeros_like(acc_ref)

    acc_ref[...] += jnp.dot(w_ref[...], p_ref[...],
                            preferred_element_type=jnp.float32)

    @pl.when(k == pl.num_programs(2) - 1)
    def _():
        # bias add stays f32, lane-dense store (last dim = tm, multiple of 128).
        o_ref[...] = (acc_ref[...] + b_ref[...]).astype(o_ref.dtype)


def downsample(x, weight, bias, *, compute_dtype=jnp.bfloat16):
    """Equivalent of nn.Conv2d(dim, dim, 3, 2, 1)(x) with x in NCHW."""
    N, C, H, W = x.shape
    Cout, Cin, KH, KW = weight.shape
    assert Cin == C and (KH, KW) == (3, 3)
    stride = 2
    Hout = (H + 2 - 3) // stride + 1
    Wout = (W + 2 - 3) // stride + 1
    M = N * Hout * Wout
    K = 9 * C

    # ---- glue (plain JAX; XLA fuses pad + strided gathers into one fusion) ----
    # im2col laid out K-major so the Pallas output is lane-dense:
    #   patches_t[(kh*3 + kw)*C + cin, n*Hout*Wout + ho*Wout + wo]
    # TODO(synk): fully fuse patch extraction into the kernel (row-stripe DMA
    # with halo + strided ref reads) to remove the materialized im2col tensor.
    x_pad = jnp.pad(x.astype(compute_dtype), ((0, 0), (0, 0), (1, 1), (1, 1)))
    taps = []
    for kh in range(3):
        for kw in range(3):
            tap = jax.lax.slice(
                x_pad,
                (0, 0, kh, kw),
                (N, C, kh + stride * (Hout - 1) + 1, kw + stride * (Wout - 1) + 1),
                (1, 1, stride, stride),
            )  # (N, C, Hout, Wout)
            taps.append(tap)
    patches = jnp.stack(taps, axis=0)                            # (9, N, C, Hout, Wout)
    patches_t = jnp.transpose(patches, (0, 2, 1, 3, 4)).reshape(K, M)

    # weight (Cout, Cin, 3, 3) -> (Cout, 3, 3, Cin) -> (Cout, 9*Cin); same K order.
    w_t = jnp.transpose(weight, (0, 2, 3, 1)).reshape(Cout, K).astype(compute_dtype)
    b_col = bias.reshape(Cout, 1).astype(jnp.float32)            # bias add stays f32

    # ---- tile-size selection (pad with zeros; padding is sliced off below) ----
    # Cout: sublane-aligned tiles of <=256 rows.
    cop = _round_up(Cout, _SUBLANE)
    tile_co = min(256, cop)
    cop = _round_up(cop, tile_co)
    # K: single reduction step while it fits VMEM comfortably, else 512-row steps.
    kp = _round_up(K, _SUBLANE)
    if kp <= 4096:
        tk = kp
    else:
        tk = 512
        kp = _round_up(kp, tk)
    # M (lane axis of the output): 512-lane tiles.
    m_lanes = _round_up(M, _LANE)
    tm = min(512, m_lanes)
    m_pad = _round_up(m_lanes, tm)

    if (cop, kp) != (Cout, K):
        w_t = jnp.pad(w_t, ((0, cop - Cout), (0, kp - K)))
    if cop != Cout:
        b_col = jnp.pad(b_col, ((0, cop - Cout), (0, 0)))
    if (kp, m_pad) != (K, M):
        patches_t = jnp.pad(patches_t, ((0, kp - K), (0, m_pad - M)))

    grid = (cop // tile_co, m_pad // tm, kp // tk)

    itemsize = jnp.dtype(compute_dtype).itemsize
    cost = pl.CostEstimate(
        flops=2 * m_pad * kp * cop,
        transcendentals=0,
        bytes_accessed=(kp * m_pad * itemsize                       # patches
                        + cop * kp * itemsize                       # weights
                        + cop * 4                                   # bias
                        + cop * m_pad * jnp.dtype(x.dtype).itemsize),  # output
    )

    out_t = pl.pallas_call(
        _conv_matmul_kernel,
        out_shape=jax.ShapeDtypeStruct((cop, m_pad), x.dtype),
        grid=grid,
        in_specs=[
            pl.BlockSpec((tile_co, tk), lambda i, j, k: (i, k)),   # weight tile
            pl.BlockSpec((tile_co, 1), lambda i, j, k: (i, 0)),    # bias (resident)
            pl.BlockSpec((tk, tm), lambda i, j, k: (k, j)),        # patch tile
        ],
        out_specs=pl.BlockSpec((tile_co, tm), lambda i, j, k: (i, j)),
        scratch_shapes=[pltpu.VMEM((tile_co, tm), jnp.float32)],   # f32 accumulator
        compiler_params=pltpu.CompilerParams(
            dimension_semantics=("parallel", "parallel", "arbitrary")),
        cost_estimate=cost,
    )(w_t, b_col, patches_t)

    out_t = out_t[:Cout, :M]                              # drop Cout / M padding
    out = out_t.reshape(Cout, N, Hout, Wout)
    return jnp.transpose(out, (1, 0, 2, 3))               # NCHW


if __name__ == "__main__":
    key = jax.random.PRNGKey(0)
    k_x, k_w, k_b = jax.random.split(key, 3)

    # Module config: Downsample(dim=4); input (N=2, C=4, H=16, W=16) NCHW.
    dim = 4
    N, H, W = 2, 16, 16

    x = jax.random.normal(k_x, (N, dim, H, W), dtype=jnp.float32)

    # Deterministic parameter init (PyTorch-style uniform bound = 1/sqrt(fan_in)).
    fan_in = dim * 3 * 3
    bound = 1.0 / np.sqrt(fan_in)
    weight = jax.random.uniform(k_w, (dim, dim, 3, 3), jnp.float32, -bound, bound)
    bias = jax.random.uniform(k_b, (dim,), jnp.float32, -bound, bound)

    out = jax.jit(downsample)(x, weight, bias)
    out = jax.block_until_ready(out)

    # Reference: XLA conv on bf16-rounded operands (the kernel feeds bf16 to the
    # MXU with f32 accumulation, so per-element products are exact; only the
    # f32 summation order differs).
    x_r = x.astype(jnp.bfloat16).astype(jnp.float32)
    w_r = weight.astype(jnp.bfloat16).astype(jnp.float32)
    ref = jax.lax.conv_general_dilated(
        x_r, w_r, window_strides=(2, 2), padding=((1, 1), (1, 1)),
        dimension_numbers=("NCHW", "OIHW", "NCHW"),
    ) + bias[None, :, None, None]
    ref = jax.block_until_ready(ref)

    assert out.shape == (N, dim, H // 2, W // 2), out.shape
    np.testing.assert_allclose(np.asarray(out), np.asarray(ref), rtol=1e-4, atol=1e-4)

    print("KERNEL_OK")
</pallas_src>

<mosaic_0001>
module attributes {stable_mosaic.version = 11 : i64} {
  func.func @_conv_matmul_kernel(%arg0: i32, %arg1: i32, %arg2: i32, %arg3: memref<8x40xbf16, #tpu.memory_space<vmem>>, %arg4: memref<8x1xf32, #tpu.memory_space<vmem>>, %arg5: memref<40x128xbf16, #tpu.memory_space<vmem>>, %arg6: memref<8x128xf32, #tpu.memory_space<vmem>>, %arg7: memref<8x128xf32, #tpu.memory_space<vmem>>) attributes {dimension_semantics = [#tpu.dimension_semantics<parallel>, #tpu.dimension_semantics<parallel>, #tpu.dimension_semantics<arbitrary>], iteration_bounds = array<i64: 1, 1, 1>, scalar_prefetch = 0 : i64, scratch_operands = 1 : i64, tpu.core_type = #tpu.core_type<tc>, window_params = [{transform_indices = @transform_0, window_bounds = array<i64: 8, 40>}, {transform_indices = @transform_1, window_bounds = array<i64: 8, 1>}, {transform_indices = @transform_2, window_bounds = array<i64: 40, 128>}, {transform_indices = @transform_3, window_bounds = array<i64: 8, 128>}]} {
    %c0_i32 = arith.constant 0 : i32
    %0 = arith.cmpi eq, %arg2, %c0_i32 : i32
    %1 = arith.extui %0 : i1 to i32
    %c0_i32_0 = arith.constant 0 : i32
    %2 = arith.cmpi ne, %1, %c0_i32_0 : i32
    scf.if %2 {
      %cst_10 = arith.constant 0.000000e+00 : f32
      %12 = vector.broadcast %cst_10 : f32 to vector<8x128xf32>
      %c0_11 = arith.constant 0 : index
      %c0_12 = arith.constant 0 : index
      %13 = vector.load %arg7[%c0_11, %c0_12] : memref<8x128xf32, #tpu.memory_space<vmem>>, vector<8x128xf32>
      tpu.vector_store %arg7[%c0_11, %c0_12], %12 {strides = array<i32>} : memref<8x128xf32, #tpu.memory_space<vmem>>, vector<8x128xf32>,
    } else {
    }
    %c0 = arith.constant 0 : index
    %c0_1 = arith.constant 0 : index
    %3 = vector.load %arg7[%c0, %c0_1] : memref<8x128xf32, #tpu.memory_space<vmem>>, vector<8x128xf32>
    %c0_2 = arith.constant 0 : index
    %c0_3 = arith.constant 0 : index
    %4 = vector.load %arg3[%c0_2, %c0_3] : memref<8x40xbf16, #tpu.memory_space<vmem>>, vector<8x40xbf16>
    %c0_4 = arith.constant 0 : index
    %c0_5 = arith.constant 0 : index
    %5 = vector.load %arg5[%c0_4, %c0_5] : memref<40x128xbf16, #tpu.memory_space<vmem>>, vector<40x128xbf16>
    %cst = arith.constant dense<0.000000e+00> : vector<8x128xf32>
    %6 = tpu.matmul %4, %5, %cst {dimension_numbers = #tpu.dot_dimension_numbers<[1], [0], [0], [1], [0, 0, 1, 1], [], []>} : vector<8x40xbf16>, vector<40x128xbf16>, vector<8x128xf32> -> vector<8x128xf32>
    %7 = arith.addf %3, %6 : vector<8x128xf32>
    %c0_6 = arith.constant 0 : index
    %c0_7 = arith.constant 0 : index
    %8 = vector.load %arg7[%c0_6, %c0_7] : memref<8x128xf32, #tpu.memory_space<vmem>>, vector<8x128xf32>
    tpu.vector_store %arg7[%c0_6, %c0_7], %7 {strides = array<i32>} : memref<8x128xf32, #tpu.memory_space<vmem>>, vector<8x128xf32>,
    %c0_i32_8 = arith.constant 0 : i32
    %9 = arith.cmpi eq, %arg2, %c0_i32_8 : i32
    %10 = arith.extui %9 : i1 to i32
    %c0_i32_9 = arith.constant 0 : i32
    %11 = arith.cmpi ne, %10, %c0_i32_9 : i32
    scf.if %11 {
      %c0_10 = arith.constant 0 : index
      %c0_11 = arith.constant 0 : index
      %12 = vector.load %arg7[%c0_10, %c0_11] : memref<8x128xf32, #tpu.memory_space<vmem>>, vector<8x128xf32>
      %c0_12 = arith.constant 0 : index
      %c0_13 = arith.constant 0 : index
      %13 = vector.load %arg4[%c0_12, %c0_13] : memref<8x1xf32, #tpu.memory_space<vmem>>, vector<8x1xf32>
      %14 = vector.broadcast %13 : vector<8x1xf32> to vector<8x128xf32>
      %15 = arith.addf %12, %14 : vector<8x128xf32>
      %c0_14 = arith.constant 0 : index
      %c0_15 = arith.constant 0 : index
      %16 = vector.load %arg6[%c0_14, %c0_15] : memref<8x128xf32, #tpu.memory_space<vmem>>, vector<8x128xf32>
      tpu.vector_store %arg6[%c0_14, %c0_15], %15 {strides = array<i32>} : memref<8x128xf32, #tpu.memory_space<vmem>>, vector<8x128xf32>,
    } else {
    }
    return
  }
  func.func @transform_0(%arg0: i32, %arg1: i32, %arg2: i32) -> (i32, i32) {
    %c0_i32 = arith.constant 0 : i32
    return %arg0, %arg2 : i32, i32
  }
  func.func @transform_1(%arg0: i32, %arg1: i32, %arg2: i32) -> (i32, i32) {
    %c0_i32 = arith.constant 0 : i32
    %c0_i32_0 = arith.constant 0 : i32
    return %arg0, %c0_i32 : i32, i32
  }
  func.func @transform_2(%arg0: i32, %arg1: i32, %arg2: i32) -> (i32, i32) {
    %c0_i32 = arith.constant 0 : i32
    return %arg2, %arg1 : i32, i32
  }
  func.func @transform_3(%arg0: i32, %arg1: i32, %arg2: i32) -> (i32, i32) {
    %c0_i32 = arith.constant 0 : i32
    return %arg0, %arg1 : i32, i32
  }
}

</mosaic_0001>

<llo_original>
// kernel: downsample.1
$region0: #{downsample.1}
  #allocation0 [shape = 'u32[]', space=smem, size = 0x4, offset = 0x4, fixed_abs, tag = 'smem constant byte address 0x4 - core index']
  #allocation1 [shape = 'u32[144,128]{1,0:T(1,128)}', space=vmem, size = 0x12000, scoped, tag = 'internal scratch']
  #allocation2 [shape = 'f32[8,128]{1,0:T(8,128)}', space=vmem, size = 0x1000, scoped, tag = 'scratch operand']
  %s0 = inlined_call_operand.vmem [shape: bf16[8,40], index: 0, kind: input, shape index: {}]
  %s1 = inlined_call_operand.vmem [shape: f32[8,1], index: 1, kind: input, shape index: {}]
  %s2 = inlined_call_operand.vmem [shape: bf16[40,128], index: 2, kind: input, shape index: {}]
  %s3 = inlined_call_operand.vmem [shape: f32[8,128], index: 3, kind: output, shape index: {}]
  %s4 = sld [smem:[#allocation0]]
  $region30: #{downsample.1} parent=0
    _
  %s6 = ssub.s32 1, %s4
  %s7 = scalar_select 0, %s6, %s4
  // Predicated region
  $region2: #{downsample.1} parent=0 // pred_check
    _
  $region3: #{downsample.1} parent=0 // pred_check_branch
    %9 = sbr.rel (0) target = $region5
  $region4: #{downsample.1} parent=0 // pred_region
    _
  $region5: #{downsample.1} parent=0 // pred_fallthru
    _
  // Predicated region
  $region6: #{downsample.1} parent=0 // pred_check
    _
  $region7: #{downsample.1} parent=0 // pred_check_branch
    %11 = sbr.rel (0) target = $region9
  $region8: #{downsample.1} parent=0 // pred_region
    _
  $region9: #{downsample.1} parent=0 // pred_fallthru
    _
  // Predicated region
  $region10: #{downsample.1} parent=0 // pred_check
    _
  $region11: #{downsample.1} parent=0 // pred_check_branch
    %13 = sbr.rel (0) target = $region13
  $region12: #{downsample.1} parent=0 // pred_region
    _
  $region13: #{downsample.1} parent=0 // pred_fallthru
    _
  %p15 = scmp.eq.s32.totalorder 0, 0
  // Predicated region
  $region14: #{downsample.1} parent=0 // pred_check
    %p16 = pneg %p15
  $region15: #{downsample.1} parent=0 // pred_check_branch
    %18 = sbr.rel (%p16) target = $region17
  $region16: #{downsample.1} parent=0 // pred_region
    %19 = vst [vmem:[#allocation2] sm:$0xff] 0.0
  $region17: #{downsample.1} parent=0 // pred_fallthru
    _
  %v20 = vld [vmem:[#allocation2] sm:$0xff]
  %v21 = vld [vmem:[%s0] sm:$0xf]
  %v22 = vld [vmem:[%s2] sm:$0xf]
  %v23 = vld [vmem:[%s2 + $0x4] sm:$0xf]
  %v24 = vld [vmem:[%s2 + $0x8] sm:$0xf]
  %v25 = vld [vmem:[%s2 + $0xc] sm:$0xf]
  %v26 = vld [vmem:[%s2 + $0x10] sm:$0xf]
  %v32 = vunpack.c.l.b16 %v22
  %v33 = vunpack.c.l.b16 %v23
  %v34 = vunpack.c.l.b16 %v24
  %v35 = vunpack.c.l.b16 %v25
  %v36 = vunpack.c.l.b16 %v26
  %v37 = vpack.c.b16 %v33, %v32
  %v38 = vpack.c.b16 %v35, %v34
  %v39 = vpack.c.b16 %v36, %v36
  %vm42 = vcmask 326656
  %v44 = vsel %vm42, %v21, 0
  %vm46 = vcmask 1043456
  %v48 = vsel %vm46, %v39, 0
  %50 = vmatprep.subr.bf16.mxu0 0
  %51 = vmatpush1.bf16.msra.mxu0 %v37
  %52 = vmatprep.subr.bf16.mxu0 0
  %53 = vmatpush1.bf16.msra.mxu0 %v38
  %54 = vmatprep.subr.bf16.mxu0 0
  %55 = vmatpush1.bf16.msra.mxu0 %v48
  %56 = vmatprep.subr.bf16.mxu0 0
  %57 = vmatpush1.bf16.msra.mxu0 0
  %58 = vmatprep.subr.bf16.mxu0 0
  %59 = vmatpush1.bf16.msra.mxu0 0
  %60 = vmatprep.subr.bf16.mxu0 0
  %61 = vmatpush1.bf16.msra.mxu0 0
  %62 = vmatprep.subr.bf16.mxu0 0
  %63 = vmatpush1.bf16.msra.mxu0 0
  %64 = vmatprep.subr.bf16.mxu0 0
  %65 = vmatpush1.bf16.msra.mxu0 0
  %66 = vmatprep.subr.bf16.mxu0 0
  %67 = vmatpush1.bf16.msra.mxu0 0
  %68 = vmatprep.subr.bf16.mxu0 0
  %69 = vmatpush1.bf16.msra.mxu0 0
  %70 = vmatprep.subr.bf16.mxu0 0
  %71 = vmatpush1.bf16.msra.mxu0 0
  %72 = vmatprep.subr.bf16.mxu0 0
  %73 = vmatpush1.bf16.msra.mxu0 0
  %74 = vmatprep.subr.bf16.mxu0 0
  %75 = vmatpush1.bf16.msra.mxu0 0
  %76 = vmatprep.subr.bf16.mxu0 0
  %77 = vmatpush1.bf16.msra.mxu0 0
  %78 = vmatprep.subr.bf16.mxu0 0
  %79 = vmatpush1.bf16.msra.mxu0 0
  %80 = vmatprep.subr.bf16.mxu0 0
  %81 = vmatpush1.bf16.msra.mxu0 0
  %82 = vmatprep.mubr.bf16.mxu0 0
  %83 = vmatmul.mubr.bf16.gmra.mrb[0].mxu0 %v44
  %v84 = vpop.f32.mrb[0].mxu0
  %v85 = vadd.f32 0.0, %v84
  %v86 = vpop.f32.mrb[0].mxu0
  %v87 = vpop.f32.mrb[0].mxu0
  %v88 = vpop.f32.mrb[0].mxu0
  %89 = vdwg.mxu0
  %v90 = vadd.f32 %v20, %v85
  %91 = vst [vmem:[#allocation2] sm:$0xff] %v90
  // Predicated region
  $region18: #{downsample.1} parent=0 // pred_check
    %p92 = pneg %p15
  $region19: #{downsample.1} parent=0 // pred_check_branch
    %94 = sbr.rel (%p92) target = $region21
  $region20: #{downsample.1} parent=0 // pred_region
    %v95 = vld [vmem:[#allocation2] sm:$0xff]
    %v96 = vld [vmem:[%s1] sm:$0xff]
    %98 = vset.pattern.permute.xlu0 0
    %99 = vperm.xlu0 %98, %v96
    %v100 = vpop.permute.xlu0 %99
    %v102 = vadd.f32 %v95, %v100
    %103 = vst [vmem:[%s3] sm:$0xff] %v102
  $region21: #{downsample.1} parent=0 // pred_fallthru
    _
  // Predicated region
  $region22: #{downsample.1} parent=0 // pred_check
    _
  $region23: #{downsample.1} parent=0 // pred_check_branch
    %105 = sbr.rel (0) target = $region25
  $region24: #{downsample.1} parent=0 // pred_region
    _
  $region25: #{downsample.1} parent=0 // pred_fallthru
    _
  // Predicated region
  $region26: #{downsample.1} parent=0 // pred_check
    _
  $region27: #{downsample.1} parent=0 // pred_check_branch
    %107 = sbr.rel (0) target = $region29
  $region28: #{downsample.1} parent=0 // pred_region
    _
  $region29: #{downsample.1} parent=0 // pred_fallthru
    _

</llo_original>
